<compile_context>
chip_gen: v6e
topology: v6e:2x2x1
jax: 0.10.0
libtpu: 0.0.40
codegen_flags: <defaults>
</compile_context>

<pallas_src>
import jax
import jax.numpy as jnp
from jax.experimental import pallas as pl
from jax.experimental.pallas import tpu as pltpu

BN_EPS = 1e-5


def _round_up(x, m):
    return ((x + m - 1) // m) * m


def _cdiv(a, b):
    return (a + b - 1) // b


def _vmem_capacity_bytes():
    try:
        return int(pltpu.get_tpu_info().vmem_capacity_bytes)
    except Exception:
        return 64 << 20  # conservative fallback (v7x per-TC VMEM)


def _spec(block_shape, index_map, *, resident=False):
    """BlockSpec; `resident` (constant-index) blocks are single-buffered."""
    if resident and hasattr(pl, "Buffered"):
        try:
            return pl.BlockSpec(block_shape, index_map,
                                pipeline_mode=pl.Buffered(1))
        except TypeError:
            pass
    return pl.BlockSpec(block_shape, index_map)


def _vmem_footprint(tm, K, NB, tn, itm, out_itm):
    """Approximate per-core VMEM bytes for one pipelined configuration."""
    return (K * NB * itm                 # w1' (single-buffered, resident)
            + 2 * NB * tn * itm          # w2 tile (<= double-buffered)
            + NB * 4 + 2 * tn * 4        # b1', b2 tile (f32)
            + 2 * tm * K * itm           # x tile, double-buffered
            + 2 * tm * tn * out_itm      # out tile, double-buffered
            + tm * NB * itm)             # cached intermediate h (compute dtype)


# ----------------------------- kernel body ---------------------------------

def classblock_kernel(x_ref, w1_ref, b1_ref, w2_ref, b2_ref, out_ref, h_ref):
    # add_block: Linear with eval-mode BN (+ b1) folded in.  The bf16
    # intermediate is computed once per batch tile (class-tile j == 0) and
    # cached in VMEM scratch so all class tiles reuse it.
    @pl.when(pl.program_id(1) == 0)
    def _():
        h = jnp.dot(x_ref[...], w1_ref[...],
                    preferred_element_type=jnp.float32) + b1_ref[...]
        h_ref[...] = h.astype(h_ref.dtype)

    # relu=False -> no LeakyReLU; Dropout is identity at inference.
    # classifier: Linear(num_bottleneck -> class_num), f32 MXU accumulation.
    out = jnp.dot(h_ref[...], w2_ref[...],
                  preferred_element_type=jnp.float32) + b2_ref[...]
    out_ref[...] = out.astype(out_ref.dtype)


# ------------------------- one-time parameter prep --------------------------

def prepare_params(params, *, compute_dtype=jnp.bfloat16, tn_max=1024,
                   tm_ref=512):
    """One-time prep (call ONCE, reuse across forwards): fold eval-mode
    BatchNorm and the first Linear bias into Linear-1, pad feature dims to
    lane-dense multiples of 128, cast weights to the compute dtype, and pick
    a class-dim tile tn that fits the per-core VMEM budget."""
    input_dim, num_bottleneck = params["w1"].shape
    class_num = params["w2"].shape[1]

    # Fold BN (eval) into the first Linear in f32:
    #   w1' = w1 * gamma * rsqrt(var+eps);  b1' = (b1-mean)*scale + beta
    scale = params["gamma"] * jax.lax.rsqrt(params["running_var"] + BN_EPS)
    w1f = params["w1"] * scale
    b1f = (params["b1"] - params["running_mean"]) * scale + params["beta"]

    K = _round_up(input_dim, 128)
    NB = _round_up(num_bottleneck, 128)
    itm = jnp.dtype(compute_dtype).itemsize
    cap = int(0.78 * _vmem_capacity_bytes())

    # Class-dim tile (multiple of 128); shrink until resident weights +
    # a tm_ref-row pipeline fit the VMEM cap (v7x fallback for huge class_num).
    tn = min(_round_up(class_num, 128), _round_up(tn_max, 128))
    while tn > 128 and _vmem_footprint(tm_ref, K, NB, tn, itm, 4) > cap:
        tn -= 128
    Cp = _round_up(class_num, tn)
    # TODO(synk): no K/NB tiling fallback — extremely large input_dim or
    # num_bottleneck weights that alone exceed VMEM are not handled here.

    w1p = jnp.zeros((K, NB), compute_dtype).at[:input_dim, :num_bottleneck].set(
        w1f.astype(compute_dtype))
    b1p = jnp.zeros((1, NB), jnp.float32).at[:, :num_bottleneck].set(
        b1f.astype(jnp.float32))
    w2p = jnp.zeros((NB, Cp), compute_dtype).at[:num_bottleneck, :class_num].set(
        params["w2"].astype(compute_dtype))
    b2p = jnp.zeros((1, Cp), jnp.float32).at[:, :class_num].set(
        params["b2"].astype(jnp.float32))

    return dict(w1p=w1p, b1p=b1p, w2p=w2p, b2p=b2p,
                input_dim=input_dim, class_num=class_num,
                K=K, NB=NB, Cp=Cp, tn=tn, compute_dtype=compute_dtype)


# ------------------------------- forward ------------------------------------

def class_block_forward(x, prepared, *, tm_max=512, out_dtype=jnp.float32):
    """Eval-mode ClassBlock forward: x [B, input_dim] -> logits [B, class_num]."""
    # TODO(synk): training-mode dropout / batch-stat BN not implemented (eval only).
    B, input_dim = x.shape
    assert input_dim == prepared["input_dim"]
    cdt = prepared["compute_dtype"]
    K, NB, Cp, tn = prepared["K"], prepared["NB"], prepared["Cp"], prepared["tn"]
    class_num = prepared["class_num"]
    itm = jnp.dtype(cdt).itemsize
    out_itm = jnp.dtype(out_dtype).itemsize
    cap = int(0.78 * _vmem_capacity_bytes())

    # Batch tile: balance tiles to minimize padding waste, keep >= 2 grid
    # steps when possible (megacore sharding on v7x), respect VMEM cap.
    n_tiles = max(1, _cdiv(B, tm_max))
    tm = _round_up(_cdiv(B, n_tiles), 16)
    if _cdiv(B, tm) < 2 and B > 16:
        tm = _round_up(_cdiv(B, 2), 16)
    while tm > 16 and _vmem_footprint(tm, K, NB, tn, itm, out_itm) > cap:
        tm = _round_up(tm // 2, 16)
    Bp = _round_up(B, tm)

    # Skip the padding copy when x is already aligned (cast only / passthrough).
    if B == Bp and input_dim == K:
        xp = x if x.dtype == cdt else x.astype(cdt)
    else:
        xp = jnp.zeros((Bp, K), cdt).at[:B, :input_dim].set(x.astype(cdt))

    footprint = _vmem_footprint(tm, K, NB, tn, itm, out_itm)
    vmem_limit = max(min(int(footprint * 1.3) + (4 << 20), cap), 16 << 20)

    grid = (Bp // tm, Cp // tn)
    single_c = (Cp == tn)   # class-dim fully resident -> single-buffer w2/b2

    out = pl.pallas_call(
        classblock_kernel,
        out_shape=jax.ShapeDtypeStruct((Bp, Cp), out_dtype),
        grid=grid,
        in_specs=[
            pl.BlockSpec((tm, K), lambda i, j: (i, 0)),               # x (streamed)
            _spec((K, NB), lambda i, j: (0, 0), resident=True),       # w1' (BN folded)
            _spec((1, NB), lambda i, j: (0, 0), resident=True),       # b1'
            _spec((NB, tn), lambda i, j: (0, j), resident=single_c),  # w2
            _spec((1, tn), lambda i, j: (0, j), resident=single_c),   # b2
        ],
        out_specs=pl.BlockSpec((tm, tn), lambda i, j: (i, j)),
        scratch_shapes=[pltpu.VMEM((tm, NB), cdt)],                   # cached h
        compiler_params=pltpu.CompilerParams(
            dimension_semantics=("parallel", "arbitrary"),
            vmem_limit_bytes=vmem_limit),
    )(xp, prepared["w1p"], prepared["b1p"], prepared["w2p"], prepared["b2p"])

    return out[:B, :class_num]


# ------------------------- params / reference / test ------------------------

def init_params(key, input_dim, num_bottleneck, class_num):
    k1, k2, k3 = jax.random.split(key, 3)
    # weights_init_kaiming for Linear: kaiming_normal_(mode='fan_out'), bias=0
    w1 = jax.random.normal(k1, (input_dim, num_bottleneck), jnp.float32) * jnp.sqrt(
        2.0 / num_bottleneck)
    b1 = jnp.zeros((1, num_bottleneck), jnp.float32)
    # BatchNorm1d: weight ~ N(1.0, 0.02), bias = 0, running stats at defaults
    gamma = 1.0 + 0.02 * jax.random.normal(k2, (1, num_bottleneck), jnp.float32)
    beta = jnp.zeros((1, num_bottleneck), jnp.float32)
    running_mean = jnp.zeros((1, num_bottleneck), jnp.float32)
    running_var = jnp.ones((1, num_bottleneck), jnp.float32)
    # weights_init_classifier: normal std=0.001, bias=0
    w2 = 0.001 * jax.random.normal(k3, (num_bottleneck, class_num), jnp.float32)
    b2 = jnp.zeros((1, class_num), jnp.float32)
    return dict(w1=w1, b1=b1, gamma=gamma, beta=beta,
                running_mean=running_mean, running_var=running_var,
                w2=w2, b2=b2)


def class_block_ref(x, p, compute_dtype=jnp.bfloat16):
    """Reference with the same BN folding and bf16 operand rounding / f32 accumulation."""
    scale = p["gamma"] * jax.lax.rsqrt(p["running_var"] + BN_EPS)
    w1f = (p["w1"] * scale).astype(compute_dtype).astype(jnp.float32)
    b1f = ((p["b1"] - p["running_mean"]) * scale + p["beta"]).astype(jnp.float32)
    xr = x.astype(compute_dtype).astype(jnp.float32)
    h = xr @ w1f + b1f
    h = h.astype(compute_dtype).astype(jnp.float32)
    w2r = p["w2"].astype(compute_dtype).astype(jnp.float32)
    return h @ w2r + p["b2"]


if __name__ == "__main__":
    B, input_dim, num_bottleneck, class_num = 8, 64, 32, 16
    key = jax.random.PRNGKey(0)
    kx, kp = jax.random.split(key)
    x = jax.random.normal(kx, (B, input_dim), jnp.float32)
    params = init_params(kp, input_dim, num_bottleneck, class_num)

    prepared = prepare_params(params)          # one-time: BN fold + pad + cast
    out = class_block_forward(x, prepared)
    out = jax.block_until_ready(out)

    ref = class_block_ref(x, params)
    assert out.shape == (B, class_num)
    assert jnp.allclose(out, ref, atol=2e-4, rtol=2e-3), "mismatch vs reference"
    print("KERNEL_OK")
</pallas_src>

<mosaic_0001>
module attributes {stable_mosaic.version = 11 : i64} {
  func.func @classblock_kernel(%arg0: i32, %arg1: i32, %arg2: memref<16x128xbf16, #tpu.memory_space<vmem>>, %arg3: memref<128x128xbf16, #tpu.memory_space<vmem>>, %arg4: memref<1x128xf32, #tpu.memory_space<vmem>>, %arg5: memref<128x128xbf16, #tpu.memory_space<vmem>>, %arg6: memref<1x128xf32, #tpu.memory_space<vmem>>, %arg7: memref<16x128xf32, #tpu.memory_space<vmem>>, %arg8: memref<16x128xbf16, #tpu.memory_space<vmem>>) attributes {dimension_semantics = [#tpu.dimension_semantics<parallel>, #tpu.dimension_semantics<arbitrary>], iteration_bounds = array<i64: 1, 1>, scalar_prefetch = 0 : i64, scratch_operands = 1 : i64, tpu.core_type = #tpu.core_type<tc>, window_params = [{transform_indices = @transform_0, window_bounds = array<i64: 16, 128>}, {pipeline_mode = #tpu.pipeline_mode<synchronous>, transform_indices = @transform_1, window_bounds = array<i64: 128, 128>}, {pipeline_mode = #tpu.pipeline_mode<synchronous>, transform_indices = @transform_2, window_bounds = array<i64: 1, 128>}, {pipeline_mode = #tpu.pipeline_mode<synchronous>, transform_indices = @transform_3, window_bounds = array<i64: 128, 128>}, {pipeline_mode = #tpu.pipeline_mode<synchronous>, transform_indices = @transform_4, window_bounds = array<i64: 1, 128>}, {transform_indices = @transform_5, window_bounds = array<i64: 16, 128>}]} {
    %c0_i32 = arith.constant 0 : i32
    %0 = arith.cmpi eq, %arg1, %c0_i32 : i32
    %1 = arith.extui %0 : i1 to i32
    %c0_i32_0 = arith.constant 0 : i32
    %2 = arith.cmpi ne, %1, %c0_i32_0 : i32
    scf.if %2 {
      %c0_8 = arith.constant 0 : index
      %c0_9 = arith.constant 0 : index
      %10 = vector.load %arg2[%c0_8, %c0_9] : memref<16x128xbf16, #tpu.memory_space<vmem>>, vector<16x128xbf16>
      %c0_10 = arith.constant 0 : index
      %c0_11 = arith.constant 0 : index
      %11 = vector.load %arg3[%c0_10, %c0_11] : memref<128x128xbf16, #tpu.memory_space<vmem>>, vector<128x128xbf16>
      %cst_12 = arith.constant dense<0.000000e+00> : vector<16x128xf32>
      %12 = tpu.matmul %10, %11, %cst_12 {dimension_numbers = #tpu.dot_dimension_numbers<[1], [0], [0], [1], [0, 0, 1, 1], [], []>} : vector<16x128xbf16>, vector<128x128xbf16>, vector<16x128xf32> -> vector<16x128xf32>
      %c0_13 = arith.constant 0 : index
      %c0_14 = arith.constant 0 : index
      %13 = vector.load %arg4[%c0_13, %c0_14] : memref<1x128xf32, #tpu.memory_space<vmem>>, vector<1x128xf32>
      %14 = vector.broadcast %13 : vector<1x128xf32> to vector<16x128xf32>
      %15 = arith.addf %12, %14 : vector<16x128xf32>
      %16 = arith.truncf %15 : vector<16x128xf32> to vector<16x128xbf16>
      %c0_15 = arith.constant 0 : index
      %c0_16 = arith.constant 0 : index
      %17 = vector.load %arg8[%c0_15, %c0_16] : memref<16x128xbf16, #tpu.memory_space<vmem>>, vector<16x128xbf16>
      tpu.vector_store %arg8[%c0_15, %c0_16], %16 {strides = array<i32>} : memref<16x128xbf16, #tpu.memory_space<vmem>>, vector<16x128xbf16>,
    } else {
    }
    %c0 = arith.constant 0 : index
    %c0_1 = arith.constant 0 : index
    %3 = vector.load %arg8[%c0, %c0_1] : memref<16x128xbf16, #tpu.memory_space<vmem>>, vector<16x128xbf16>
    %c0_2 = arith.constant 0 : index
    %c0_3 = arith.constant 0 : index
    %4 = vector.load %arg5[%c0_2, %c0_3] : memref<128x128xbf16, #tpu.memory_space<vmem>>, vector<128x128xbf16>
    %cst = arith.constant dense<0.000000e+00> : vector<16x128xf32>
    %5 = tpu.matmul %3, %4, %cst {dimension_numbers = #tpu.dot_dimension_numbers<[1], [0], [0], [1], [0, 0, 1, 1], [], []>} : vector<16x128xbf16>, vector<128x128xbf16>, vector<16x128xf32> -> vector<16x128xf32>
    %c0_4 = arith.constant 0 : index
    %c0_5 = arith.constant 0 : index
    %6 = vector.load %arg6[%c0_4, %c0_5] : memref<1x128xf32, #tpu.memory_space<vmem>>, vector<1x128xf32>
    %7 = vector.broadcast %6 : vector<1x128xf32> to vector<16x128xf32>
    %8 = arith.addf %5, %7 : vector<16x128xf32>
    %c0_6 = arith.constant 0 : index
    %c0_7 = arith.constant 0 : index
    %9 = vector.load %arg7[%c0_6, %c0_7] : memref<16x128xf32, #tpu.memory_space<vmem>>, vector<16x128xf32>
    tpu.vector_store %arg7[%c0_6, %c0_7], %8 {strides = array<i32>} : memref<16x128xf32, #tpu.memory_space<vmem>>, vector<16x128xf32>,
    return
  }
  func.func @transform_0(%arg0: i32, %arg1: i32) -> (i32, i32) {
    %c0_i32 = arith.constant 0 : i32
    %c0_i32_0 = arith.constant 0 : i32
    return %arg0, %c0_i32 : i32, i32
  }
  func.func @transform_1(%arg0: i32, %arg1: i32) -> (i32, i32) {
    %c0_i32 = arith.constant 0 : i32
    %c0_i32_0 = arith.constant 0 : i32
    %c0_i32_1 = arith.constant 0 : i32
    return %c0_i32, %c0_i32_0 : i32, i32
  }
  func.func @transform_2(%arg0: i32, %arg1: i32) -> (i32, i32) {
    %c0_i32 = arith.constant 0 : i32
    %c0_i32_0 = arith.constant 0 : i32
    %c0_i32_1 = arith.constant 0 : i32
    return %c0_i32, %c0_i32_0 : i32, i32
  }
  func.func @transform_3(%arg0: i32, %arg1: i32) -> (i32, i32) {
    %c0_i32 = arith.constant 0 : i32
    %c0_i32_0 = arith.constant 0 : i32
    return %c0_i32, %arg1 : i32, i32
  }
  func.func @transform_4(%arg0: i32, %arg1: i32) -> (i32, i32) {
    %c0_i32 = arith.constant 0 : i32
    %c0_i32_0 = arith.constant 0 : i32
    return %c0_i32, %arg1 : i32, i32
  }
  func.func @transform_5(%arg0: i32, %arg1: i32) -> (i32, i32) {
    %c0_i32 = arith.constant 0 : i32
    return %arg0, %arg1 : i32, i32
  }
}

</mosaic_0001>

<llo_original>
// kernel: tpu_custom_call.1
$region0: #{tpu_custom_call.1}
  #allocation0 [shape = 'u32[]', space=smem, size = 0x4, offset = 0x4, fixed_abs, tag = 'smem constant byte address 0x4 - core index']
  #allocation1 [shape = 'u32[144,128]{1,0:T(1,128)}', space=vmem, size = 0x12000, scoped, tag = 'internal scratch']
  #allocation2 [shape = 'bf16[16,128]{1,0:T(8,128)(2,1)}', space=vmem, size = 0x1000, scoped, tag = 'scratch operand']
  %s0 = inlined_call_operand.hbm [shape: bf16[16,128], index: 0, kind: input, shape index: {}]
  %s1 = inlined_call_operand.hbm [shape: bf16[128,128], index: 1, kind: input, shape index: {}]
  %s2 = inlined_call_operand.vmem [shape: f32[1,128], index: 2, kind: input, shape index: {}]
  %s3 = inlined_call_operand.hbm [shape: bf16[128,128], index: 3, kind: input, shape index: {}]
  %s4 = inlined_call_operand.vmem [shape: f32[1,128], index: 4, kind: input, shape index: {}]
  %s5 = inlined_call_operand.hbm [shape: f32[16,128], index: 5, kind: output, shape index: {}]
  %s6 = sld [smem:[#allocation0]]
  $region46: #{tpu_custom_call.1} parent=0
    _
  %s8 = ssub.s32 1, %s6
  %s9 = scalar_select 0, %s8, %s6
  $region1: #{tpu_custom_call.1} parent=0
    #allocation3 [shape = 'u8[4096]{0}', space=vmem, size = 0x1000, scoped, tag = 'input window, operand 0, single buffered']
    #allocation4 [shape = 's32[1]{0}', space=sflag, size = 0x4, scoped, tag = 'scoped memory for tpu_custom_call.1']
    #allocation5 [shape = 's32[1]{0}', space=sflag, size = 0x4, scoped, tag = 'scoped memory for tpu_custom_call.1']
    #allocation6 [shape = 'u8[32768]{0}', space=vmem, size = 0x8000, scoped, tag = 'input window, operand 1, single buffered']
    #allocation7 [shape = 's32[1]{0}', space=sflag, size = 0x4, scoped, tag = 'scoped memory for tpu_custom_call.1']
    #allocation8 [shape = 'u8[32768]{0}', space=vmem, size = 0x8000, scoped, tag = 'input window, operand 3, single buffered']
    #allocation9 [shape = 'u8[8192]{0}', space=vmem, size = 0x2000, scoped, tag = 'output window, operand 0, single buffered']
    %10 = vsyncpa [#allocation4], 0
    %11 = vsyncpa [#allocation7], 0
    %12 = vsyncpa [#allocation5], 0
    // Predicated region
    $region2: #{tpu_custom_call.1} parent=1 // pred_check
      _
    $region3: #{tpu_custom_call.1} parent=1 // pred_check_branch
      %14 = sbr.rel (0) target = $region5
    $region4: #{tpu_custom_call.1} parent=1 // pred_region
      %s16 = ssub.s32 128, 128
      %17 = vsyncadd [#allocation4], %s16
      %s18 = sshll.u32 [#allocation3], 4
      %s19 = int_to_ptr.vmem [resolvable:$true] %s18
      %24 = dma.hbm_to_vmem [thread:$0]  %s0, 128, %s19, [#allocation4], 64, 64, 4
    $region5: #{tpu_custom_call.1} parent=1 // pred_fallthru
      _
    // Predicated region
    $region6: #{tpu_custom_call.1} parent=1 // pred_check
      _
    $region7: #{tpu_custom_call.1} parent=1 // pred_check_branch
      %26 = sbr.rel (0) target = $region9
    $region8: #{tpu_custom_call.1} parent=1 // pred_region
      %s28 = ssub.s32 1024, 1024
      %29 = vsyncadd [#allocation7], %s28
      %s30 = sshll.u32 [#allocation6], 4
      %s31 = int_to_ptr.vmem [resolvable:$true] %s30
      %36 = dma.hbm_to_vmem [thread:$0]  %s1, 1024, %s31, [#allocation7], 64, 64, 4
    $region9: #{tpu_custom_call.1} parent=1 // pred_fallthru
      _
    // Predicated region
    $region10: #{tpu_custom_call.1} parent=1 // pred_check
      _
    $region11: #{tpu_custom_call.1} parent=1 // pred_check_branch
      %38 = sbr.rel (0) target = $region13
    $region12: #{tpu_custom_call.1} parent=1 // pred_region
      _
    $region13: #{tpu_custom_call.1} parent=1 // pred_fallthru
      _
    // Predicated region
    $region14: #{tpu_custom_call.1} parent=1 // pred_check
      _
    $region15: #{tpu_custom_call.1} parent=1 // pred_check_branch
      %40 = sbr.rel (0) target = $region17
    $region16: #{tpu_custom_call.1} parent=1 // pred_region
      %s42 = ssub.s32 1024, 1024
      %43 = vsyncadd [#allocation7], %s42
      %s44 = sshll.u32 [#allocation8], 4
      %s45 = int_to_ptr.vmem [resolvable:$true] %s44
      %50 = dma.hbm_to_vmem [thread:$0]  %s3, 1024, %s45, [#allocation7], 64, 64, 4
    $region17: #{tpu_custom_call.1} parent=1 // pred_fallthru
      _
    // Predicated region
    $region18: #{tpu_custom_call.1} parent=1 // pred_check
      _
    $region19: #{tpu_custom_call.1} parent=1 // pred_check_branch
      %52 = sbr.rel (0) target = $region21
    $region20: #{tpu_custom_call.1} parent=1 // pred_region
      _
    $region21: #{tpu_custom_call.1} parent=1 // pred_fallthru
      _
    // Predicated region
    $region22: #{tpu_custom_call.1} parent=1 // pred_check
      _
    $region23: #{tpu_custom_call.1} parent=1 // pred_check_branch
      %54 = sbr.rel (0) target = $region25
    $region24: #{tpu_custom_call.1} parent=1 // pred_region
      %55 = dma.done [#allocation4], 128
    $region25: #{tpu_custom_call.1} parent=1 // pred_fallthru
      _
    // Predicated region
    $region26: #{tpu_custom_call.1} parent=1 // pred_check
      _
    $region27: #{tpu_custom_call.1} parent=1 // pred_check_branch
      %57 = sbr.rel (0) target = $region29
    $region28: #{tpu_custom_call.1} parent=1 // pred_region
      %58 = dma.done [#allocation7], 1024
    $region29: #{tpu_custom_call.1} parent=1 // pred_fallthru
      _
    // Predicated region
    $region30: #{tpu_custom_call.1} parent=1 // pred_check
      _
    $region31: #{tpu_custom_call.1} parent=1 // pred_check_branch
      %60 = sbr.rel (0) target = $region33
    $region32: #{tpu_custom_call.1} parent=1 // pred_region
      %61 = dma.done [#allocation7], 1024
    $region33: #{tpu_custom_call.1} parent=1 // pred_fallthru
      _
    %p63 = scmp.eq.s32.totalorder 0, 0
    // Predicated region
    $region34: #{tpu_custom_call.1} parent=1 // pred_check
      %p64 = pneg %p63
    $region35: #{tpu_custom_call.1} parent=1 // pred_check_branch
      %66 = sbr.rel (%p64) target = $region37
    $region36: #{tpu_custom_call.1} parent=1 // pred_region
      %v67 = vld [vmem:[#allocation3] sm:$0xf]
      %v68 = vld [vmem:[#allocation3 + $0x4] sm:$0xf]
      %v69 = vld [vmem:[#allocation6] sm:$0xf]
      %v70 = vld [vmem:[#allocation6 + $0x4] sm:$0xf]
      %v71 = vld [vmem:[#allocation6 + $0x8] sm:$0xf]
      %v72 = vld [vmem:[#allocation6 + $0xc] sm:$0xf]
      %v73 = vld [vmem:[#allocation6 + $0x10] sm:$0xf]
      %v74 = vld [vmem:[#allocation6 + $0x14] sm:$0xf]
      %v75 = vld [vmem:[#allocation6 + $0x18] sm:$0xf]
      %v76 = vld [vmem:[#allocation6 + $0x1c] sm:$0xf]
      %v77 = vld [vmem:[#allocation6 + $0x20] sm:$0xf]
      %v78 = vld [vmem:[#allocation6 + $0x24] sm:$0xf]
      %v79 = vld [vmem:[#allocation6 + $0x28] sm:$0xf]
      %v80 = vld [vmem:[#allocation6 + $0x2c] sm:$0xf]
      %v81 = vld [vmem:[#allocation6 + $0x30] sm:$0xf]
      %v82 = vld [vmem:[#allocation6 + $0x34] sm:$0xf]
      %v83 = vld [vmem:[#allocation6 + $0x38] sm:$0xf]
      %v84 = vld [vmem:[#allocation6 + $0x3c] sm:$0xf]
      %v85 = vld [vmem:[%s2] sm:$0x1]
      %v87 = vlaneseq
      %v88 = vshrl.u32 %v87, 7
      %v89 = vsub.s32 0, %v88
      %v90 = vrot.slane %v85, %v89
      %v94 = vunpack.c.l.b16 %v67
      %v95 = vunpack.c.l.b16 %v68
      %v96 = vpack.c.b16 %v95, %v94
      %v114 = vunpack.c.l.b16 %v69
      %v115 = vunpack.c.l.b16 %v70
      %v116 = vunpack.c.l.b16 %v71
      %v117 = vunpack.c.l.b16 %v72
      %v118 = vunpack.c.l.b16 %v73
      %v119 = vunpack.c.l.b16 %v74
      %v120 = vunpack.c.l.b16 %v75
      %v121 = vunpack.c.l.b16 %v76
      %v122 = vunpack.c.l.b16 %v77
      %v123 = vunpack.c.l.b16 %v78
      %v124 = vunpack.c.l.b16 %v79
      %v125 = vunpack.c.l.b16 %v80
      %v126 = vunpack.c.l.b16 %v81
      %v127 = vunpack.c.l.b16 %v82
      %v128 = vunpack.c.l.b16 %v83
      %v129 = vunpack.c.l.b16 %v84
      %v130 = vpack.c.b16 %v115, %v114
      %v131 = vpack.c.b16 %v117, %v116
      %v132 = vpack.c.b16 %v119, %v118
      %v133 = vpack.c.b16 %v121, %v120
      %v134 = vpack.c.b16 %v123, %v122
      %v135 = vpack.c.b16 %v125, %v124
      %v136 = vpack.c.b16 %v127, %v126
      %v137 = vpack.c.b16 %v129, %v128
      %146 = vmatprep.subr.bf16.mxu0 0
      %147 = vmatpush1.bf16.msra.mxu0 %v137
      %148 = vmatprep.subr.bf16.mxu0 0
      %149 = vmatpush1.bf16.msra.mxu0 %v136
      %150 = vmatprep.subr.bf16.mxu0 0
      %151 = vmatpush1.bf16.msra.mxu0 %v135
      %152 = vmatprep.subr.bf16.mxu0 0
      %153 = vmatpush1.bf16.msra.mxu0 %v134
      %154 = vmatprep.subr.bf16.mxu0 0
      %155 = vmatpush1.bf16.msra.mxu0 %v133
      %156 = vmatprep.subr.bf16.mxu0 0
      %157 = vmatpush1.bf16.msra.mxu0 %v132
      %158 = vmatprep.subr.bf16.mxu0 0
      %159 = vmatpush1.bf16.msra.mxu0 %v131
      %160 = vmatprep.subr.bf16.mxu0 0
      %161 = vmatpush1.bf16.msra.mxu0 %v130
      %162 = vmatprep.subr.bf16.mxu0 0
      %163 = vmatpush2.bf16.msra.mxu0 0
      %164 = vmatprep.subr.bf16.mxu0 0
      %165 = vmatpush2.bf16.msra.mxu0 0
      %166 = vmatprep.subr.bf16.mxu0 0
      %167 = vmatpush2.bf16.msra.mxu0 0
      %168 = vmatprep.subr.bf16.mxu0 0
      %169 = vmatpush2.bf16.msra.mxu0 0
      %170 = vmatprep.subr.bf16.mxu0 0
      %171 = vmatpush2.bf16.msra.mxu0 0
      %172 = vmatprep.subr.bf16.mxu0 0
      %173 = vmatpush2.bf16.msra.mxu0 0
      %174 = vmatprep.subr.bf16.mxu0 0
      %175 = vmatpush2.bf16.msra.mxu0 0
      %176 = vmatprep.subr.bf16.mxu0 0
      %177 = vmatpush2.bf16.msra.mxu0 0
      %178 = vmatprep.mubr.bf16.mxu0 0
      %179 = vmatmul.mubr.bf16.gmra.mxu0 %v96
      %v180 = vpop.f32.mrf.mxu0
      %v181 = vadd.f32 %v90, %v180
      %v182 = vpop.f32.mrf.mxu0
      %v183 = vpop.f32.mrf.mxu0
      %v184 = vadd.f32 %v90, %v183
      %v185 = vpop.f32.mrf.mxu0
      %186 = vdwg.mxu0
      %v187 = vpack.c.bf16 %v184, %v181
      %v189 = vunpack.c.l.b16 %v187
      %v190 = vunpack.c.h.b16 %v187
      %v191 = vpack.c.b16 %v189, %v189
      %v192 = vpack.c.b16 %v190, %v190
      %195 = vst [vmem:[#allocation2] sm:$0xf] %v191
      %196 = vst [vmem:[#allocation2 + $0x4] sm:$0xf] %v192
    $region37: #{tpu_custom_call.1} parent=1 // pred_fallthru
      _
    %v197 = vld [vmem:[#allocation2] sm:$0xf]
    %v198 = vld [vmem:[#allocation2 + $0x4] sm:$0xf]
    %v199 = vld [vmem:[#allocation8] sm:$0xf]
    %v200 = vld [vmem:[#allocation8 + $0x4] sm:$0xf]
    %v201 = vld [vmem:[#allocation8 + $0x8] sm:$0xf]
    %v202 = vld [vmem:[#allocation8 + $0xc] sm:$0xf]
    %v203 = vld [vmem:[#allocation8 + $0x10] sm:$0xf]
    %v204 = vld [vmem:[#allocation8 + $0x14] sm:$0xf]
    %v205 = vld [vmem:[#allocation8 + $0x18] sm:$0xf]
    %v206 = vld [vmem:[#allocation8 + $0x1c] sm:$0xf]
    %v207 = vld [vmem:[#allocation8 + $0x20] sm:$0xf]
    %v208 = vld [vmem:[#allocation8 + $0x24] sm:$0xf]
    %v209 = vld [vmem:[#allocation8 + $0x28] sm:$0xf]
    %v210 = vld [vmem:[#allocation8 + $0x2c] sm:$0xf]
    %v211 = vld [vmem:[#allocation8 + $0x30] sm:$0xf]
    %v212 = vld [vmem:[#allocation8 + $0x34] sm:$0xf]
    %v213 = vld [vmem:[#allocation8 + $0x38] sm:$0xf]
    %v214 = vld [vmem:[#allocation8 + $0x3c] sm:$0xf]
    %v215 = vld [vmem:[%s4] sm:$0x1]
    %v217 = vlaneseq
    %v218 = vshrl.u32 %v217, 7
    %v219 = vsub.s32 0, %v218
    %v220 = vrot.slane %v215, %v219
    %v224 = vunpack.c.l.b16 %v197
    %v225 = vunpack.c.l.b16 %v198
    %v226 = vpack.c.b16 %v225, %v224
    %v244 = vunpack.c.l.b16 %v199
    %v245 = vunpack.c.l.b16 %v200
    %v246 = vunpack.c.l.b16 %v201
    %v247 = vunpack.c.l.b16 %v202
    %v248 = vunpack.c.l.b16 %v203
    %v249 = vunpack.c.l.b16 %v204
    %v250 = vunpack.c.l.b16 %v205
    %v251 = vunpack.c.l.b16 %v206
    %v252 = vunpack.c.l.b16 %v207
    %v253 = vunpack.c.l.b16 %v208
    %v254 = vunpack.c.l.b16 %v209
    %v255 = vunpack.c.l.b16 %v210
    %v256 = vunpack.c.l.b16 %v211
    %v257 = vunpack.c.l.b16 %v212
    %v258 = vunpack.c.l.b16 %v213
    %v259 = vunpack.c.l.b16 %v214
    %v260 = vpack.c.b16 %v245, %v244
    %v261 = vpack.c.b16 %v247, %v246
    %v262 = vpack.c.b16 %v249, %v248
    %v263 = vpack.c.b16 %v251, %v250
    %v264 = vpack.c.b16 %v253, %v252
    %v265 = vpack.c.b16 %v255, %v254
    %v266 = vpack.c.b16 %v257, %v256
    %v267 = vpack.c.b16 %v259, %v258
    %276 = vmatprep.subr.bf16.mxu0 0
    %277 = vmatpush1.bf16.msra.mxu0 %v267
    %278 = vmatprep.subr.bf16.mxu0 0
    %279 = vmatpush1.bf16.msra.mxu0 %v266
    %280 = vmatprep.subr.bf16.mxu0 0
    %281 = vmatpush1.bf16.msra.mxu0 %v265
    %282 = vmatprep.subr.bf16.mxu0 0
    %283 = vmatpush1.bf16.msra.mxu0 %v264
    %284 = vmatprep.subr.bf16.mxu0 0
    %285 = vmatpush1.bf16.msra.mxu0 %v263
    %286 = vmatprep.subr.bf16.mxu0 0
    %287 = vmatpush1.bf16.msra.mxu0 %v262
    %288 = vmatprep.subr.bf16.mxu0 0
    %289 = vmatpush1.bf16.msra.mxu0 %v261
    %290 = vmatprep.subr.bf16.mxu0 0
    %291 = vmatpush1.bf16.msra.mxu0 %v260
    %292 = vmatprep.subr.bf16.mxu0 0
    %293 = vmatpush2.bf16.msra.mxu0 0
    %294 = vmatprep.subr.bf16.mxu0 0
    %295 = vmatpush2.bf16.msra.mxu0 0
    %296 = vmatprep.subr.bf16.mxu0 0
    %297 = vmatpush2.bf16.msra.mxu0 0
    %298 = vmatprep.subr.bf16.mxu0 0
    %299 = vmatpush2.bf16.msra.mxu0 0
    %300 = vmatprep.subr.bf16.mxu0 0
    %301 = vmatpush2.bf16.msra.mxu0 0
    %302 = vmatprep.subr.bf16.mxu0 0
    %303 = vmatpush2.bf16.msra.mxu0 0
    %304 = vmatprep.subr.bf16.mxu0 0
    %305 = vmatpush2.bf16.msra.mxu0 0
    %306 = vmatprep.subr.bf16.mxu0 0
    %307 = vmatpush2.bf16.msra.mxu0 0
    %308 = vmatprep.mubr.bf16.mxu0 0
    %309 = vmatmul.mubr.bf16.gmra.mxu0 %v226
    %v310 = vpop.f32.mrf.mxu0
    %v311 = vadd.f32 %v220, %v310
    %v312 = vpop.f32.mrf.mxu0
    %v313 = vpop.f32.mrf.mxu0
    %v314 = vadd.f32 %v220, %v313
    %v315 = vpop.f32.mrf.mxu0
    %316 = vdwg.mxu0
    %317 = vst [vmem:[#allocation9] sm:$0xff] %v311
    %318 = vst [vmem:[#allocation9 + $0x8] sm:$0xff] %v314
    // Predicated region
    $region38: #{tpu_custom_call.1} parent=1 // pred_check
      _
    $region39: #{tpu_custom_call.1} parent=1 // pred_check_branch
      %320 = sbr.rel (0) target = $region41
    $region40: #{tpu_custom_call.1} parent=1 // pred_region
      %s322 = ssub.s32 256, 256
      %323 = vsyncadd [#allocation5], %s322
      %s324 = sshll.u32 [#allocation9], 4
      %s325 = int_to_ptr.vmem [resolvable:$true] %s324
      %330 = dma.vmem_to_hbm [thread:$0]  %s325, 256, %s5, [#allocation5], 128, 128, 8
    $region41: #{tpu_custom_call.1} parent=1 // pred_fallthru
      _
    // Predicated region
    $region42: #{tpu_custom_call.1} parent=1 // pred_check
      _
    $region43: #{tpu_custom_call.1} parent=1 // pred_check_branch
      %332 = sbr.rel (0) target = $region45
    $region44: #{tpu_custom_call.1} parent=1 // pred_region
      %333 = dma.done [#allocation5], 256
    $region45: #{tpu_custom_call.1} parent=1 // pred_fallthru
      _
    %334 = vsyncpa [#allocation4], 1
    %335 = vsyncpa [#allocation7], 1
    %336 = vsyncpa [#allocation5], 1

</llo_original>
